<compile_context>
chip_gen: v5e
topology: v5e:2x2
jax: 0.10.0
libtpu: 0.0.40
codegen_flags: <defaults>
</compile_context>

<pallas_src>
import functools

import numpy as np

import jax
import jax.numpy as jnp
from jax.experimental import pallas as pl
from jax.experimental.pallas import tpu as pltpu


# ---------------------------------------------------------------------------
# Uniform affine fake quantization (per-tensor min/max, range forced to
# include 0, zero_point clamped to [0, 2^bits - 1]).
# Used both inside the kernel (activations) and at init time (weights).
# ---------------------------------------------------------------------------
def _fake_quant(v, n_bits):
    n_levels = float(2 ** n_bits - 1)
    vmin = jnp.minimum(jnp.min(v), 0.0)
    vmax = jnp.maximum(jnp.max(v), 0.0)
    scale = jnp.maximum((vmax - vmin) / n_levels, jnp.float32(1e-8))
    # NOTE(perf): pl.reciprocal(scale, approx=True) would move this divide to
    # the otherwise-idle EUP slot, but it is only 2 scalar divides per forward
    # and the approximate reciprocal can perturb the fake-quant rounding
    # thresholds, so the exact divide is kept; the per-element hot path is
    # multiply-only either way.
    inv_scale = 1.0 / scale
    zero_point = jnp.clip(jnp.round(-vmin * inv_scale), 0.0, n_levels)
    q = jnp.clip(jnp.round(v * inv_scale) + zero_point, 0.0, n_levels)
    return (q - zero_point) * scale


# ---------------------------------------------------------------------------
# Fused Pallas kernel:
#   act-quant -> 3x3 conv (ONE matmul) -> bias + ReLU -> act-quant
#   -> linear (ONE matmul) -> bias
# ---------------------------------------------------------------------------
def fused_quant_model_kernel(x_ref, wconv_ref, bconv_ref, wlin_ref, blin_ref,
                             out_ref, *, n_bits_a, use_act_quant, apply_relu):
    n, cin, h, w = x_ref.shape            # raw NCHW input block, e.g. (2,4,16,16)
    kbig, lanes = wconv_ref.shape         # (kh*Cin*W, W*Cout) = (192, 128)
    kh = kbig // (cin * w)                # 3

    x = x_ref[...]                        # f32, fully VMEM resident

    # ---- activation fake-quant of the conv input (pre-padding, per-tensor;
    #      no interior mask needed because padding has not been applied yet,
    #      matching the PyTorch wrapper which quantizes the Conv2d input) ----
    if use_act_quant:
        x = _fake_quant(x, n_bits_a)

    # ---- NCHW -> channel-major row lanes (layout fold done in-kernel, so the
    #      wrapper has no transpose/pad and no activation HBM round trip):
    #      xt[n, h, ci*W + wi] = x[n, ci, h, wi]
    xt = jnp.concatenate([x[:, ci] for ci in range(cin)], axis=-1)   # (N,H,Cin*W)

    # ---- zero-pad H by one row each side (exact zeros, applied AFTER the
    #      activation quantizer, exactly like Conv2d's internal padding).
    #      W zero-padding is folded into the band structure of wconv. ----
    zrow = jnp.zeros((n, 1, cin * w), jnp.float32)
    xpad = jnp.concatenate([zrow, xt, zrow], axis=1)                 # (N,H+2,Cin*W)

    # ---- conv as ONE matmul: the kh row shifts are merged into the
    #      contraction dim (K = kh*Cin*W = 192). ----
    xbig = jnp.concatenate([xpad[:, dy:dy + h, :] for dy in range(kh)],
                           axis=-1)                                  # (N,H,192)
    xbig = xbig.reshape(n * h, kbig)                                 # (N*H,192)
    acc = jnp.dot(xbig, wconv_ref[...], preferred_element_type=jnp.float32)
    acc += bconv_ref[...]                    # (1, W*Cout) broadcast bias
    if apply_relu:
        acc = jnp.maximum(acc, 0.0)          # fused ReLU

    # ---- activation fake-quant of the linear input (same elements as the
    #      flattened conv output, still VMEM resident) ----
    if use_act_quant:
        acc = _fake_quant(acc, n_bits_a)

    # ---- linear as ONE matmul: flatten (N*H, W*Cout) -> (N, H*W*Cout) via a
    #      lane-aligned concat (replaces 16 tiny M=2 matmuls with 1 matmul) ----
    acc3 = acc.reshape(n, h, lanes)
    lin_in = jnp.concatenate([acc3[:, hh, :] for hh in range(h)], axis=-1)  # (N,2048)
    out_ref[...] = (jnp.dot(lin_in, wlin_ref[...],
                            preferred_element_type=jnp.float32)
                    + blin_ref[...])


def fused_quant_forward(x, wconv, bconv, wlin, blin, *, n_bits_a,
                        use_act_quant, apply_relu):
    n = x.shape[0]
    hidden = wlin.shape[1]
    kernel = functools.partial(
        fused_quant_model_kernel, n_bits_a=n_bits_a,
        use_act_quant=use_act_quant, apply_relu=apply_relu)
    # Single block, NO grid: everything (weights ~350 KiB f32 + activations
    # <100 KiB) fits VMEM comfortably, and a 1-step grid would only add
    # per-step pipeline overhead and pointless double buffers.
    # NOTE(scaling): for large batches, add a leading grid axis over N marked
    # "parallel" (uses both TensorCores on v7x) and size per-step blocks well
    # under the default scoped-VMEM limit; weights should then be amortized
    # across the batch steps (or kept VMEM-resident across calls).
    vmem = pltpu.MemorySpace.VMEM
    return pl.pallas_call(
        kernel,
        out_shape=jax.ShapeDtypeStruct((n, hidden), jnp.float32),
        in_specs=[
            pl.BlockSpec(memory_space=vmem),   # x (NCHW)
            pl.BlockSpec(memory_space=vmem),   # packed conv weight
            pl.BlockSpec(memory_space=vmem),   # conv bias row
            pl.BlockSpec(memory_space=vmem),   # packed linear weight
            pl.BlockSpec(memory_space=vmem),   # linear bias row
        ],
        out_specs=pl.BlockSpec(memory_space=vmem),
    )(x, wconv, bconv, wlin, blin)


# ---------------------------------------------------------------------------
# One-time (init) weight packing
# ---------------------------------------------------------------------------
def _pack_conv_weight(w, width):
    """(Cout, Cin, kh, kw) -> (kh*Cin*W, W*Cout) banded matrix.

    row = dy*(Cin*W) + ci*W + wi ; col = wo*Cout + co ;
    value = w[co, ci, dy, wi-wo+pad] inside the band, 0 outside. The band
    clipping at wi in {0, W-1} implements the conv's zero W-padding, and the
    row ordering matches the in-kernel xbig lane layout, so the whole 3x3 conv
    becomes a single (N*H, kh*Cin*W) @ (kh*Cin*W, W*Cout) matmul."""
    cout, cin, kh, kw = w.shape
    pad = kw // 2
    sel = np.zeros((width, width, kw), np.float32)
    for wo in range(width):
        for dx in range(kw):
            wi = wo + dx - pad
            if 0 <= wi < width:
                sel[wi, wo, dx] = 1.0
    # m5[dy, ci, wi, wo, co] = sum_dx sel[wi, wo, dx] * w[co, ci, dy, dx]
    m5 = jnp.einsum('iod,kcyd->yciok', jnp.asarray(sel), w)
    return m5.reshape(kh * cin * width, width * cout).astype(jnp.float32)


def _pack_linear_weight(w, cout, height, width):
    """(hidden, Cout*H*W) with NCHW-flatten columns -> (H*W*Cout, hidden):
    row = h*(W*Cout) + wo*Cout + co, i.e. the NCHW->"row-major lane" flatten
    permutation of the conv output is folded into the static weight."""
    hidden = w.shape[0]
    w4 = w.reshape(hidden, cout, height, width)        # (f, co, h, wo)
    w4 = jnp.transpose(w4, (2, 3, 1, 0))               # (h, wo, co, f)
    return w4.reshape(height * width * cout, hidden).astype(jnp.float32)


# ---------------------------------------------------------------------------
# QuantModel equivalent
# ---------------------------------------------------------------------------
class QuantModel:
    """JAX/Pallas analogue of the PyTorch QuantModel for a small conv+linear net.

    # TODO(synk): the generic quant_module_refactor walks an arbitrary
    # nn.Module tree; here it is specialized (and fully fused) for the concrete
    # Conv2d -> ReLU -> flatten -> Linear network used in the demo.
    """

    def __init__(self, in_channels=4, image_size=16, hidden=32,
                 n_bits_w=8, n_bits_a=8, sm_abit=8):
        self.in_channels = in_channels
        self.image_size = image_size
        self.sm_abit = sm_abit
        self.n_bits_a = n_bits_a
        self.use_weight_quant = False
        self.use_act_quant = False

        cout = 8
        key = jax.random.PRNGKey(42)
        k1, k2, k3, k4 = jax.random.split(key, 4)
        conv_w = 0.1 * jax.random.normal(k1, (cout, in_channels, 3, 3), jnp.float32)
        conv_b = 0.1 * jax.random.normal(k2, (cout,), jnp.float32)
        lin_in = cout * image_size * image_size
        lin_w = 0.05 * jax.random.normal(k3, (hidden, lin_in), jnp.float32)
        lin_b = 0.05 * jax.random.normal(k4, (hidden,), jnp.float32)

        # Static weight prep, done ONCE: band/flatten packing + weight
        # fake-quant hoisted out of the hot path.  All variants stay f32 so
        # the 8-bit fake-quant grid values are exact (bf16 storage can merge
        # adjacent levels); the kernel is overhead/DMA-bound at this size so
        # f32 matmul operands are effectively free.
        # TODO(synk): per-channel conv-weight observers (if the reference
        # QuantWrapper config uses them) would be added here at init time.
        pack_c = lambda wgt: _pack_conv_weight(wgt, image_size)
        pack_l = lambda wgt: _pack_linear_weight(wgt, cout, image_size, image_size)
        self._wconv = {False: pack_c(conv_w),
                       True: pack_c(_fake_quant(conv_w, n_bits_w))}
        self._wlin = {False: pack_l(lin_w),
                      True: pack_l(_fake_quant(lin_w, n_bits_w))}
        # conv bias replicated over the (wo, cout) lane layout; linear bias row.
        self._bconv = jnp.tile(conv_b, image_size).reshape(1, -1).astype(jnp.float32)
        self._blin = lin_b.reshape(1, -1).astype(jnp.float32)

    def set_use_quant(self, use_weight_quant=False, use_act_quant=False):
        self.use_weight_quant = use_weight_quant
        self.use_act_quant = use_act_quant

    def forward(self, x):
        # Raw NCHW tensor goes straight into the fused kernel; all layout work
        # (channel-major lanes, padding, flatten permutation) happens in VMEM
        # or in the statically packed weights.
        wq = self.use_weight_quant
        return fused_quant_forward(
            x.astype(jnp.float32), self._wconv[wq], self._bconv,
            self._wlin[wq], self._blin,
            n_bits_a=self.n_bits_a, use_act_quant=self.use_act_quant,
            apply_relu=True)

    def __call__(self, x):
        return self.forward(x)


if __name__ == "__main__":
    key = jax.random.PRNGKey(0)
    x = jax.random.normal(key, (2, 4, 16, 16), jnp.float32)  # NCHW, like PyTorch

    model = QuantModel(in_channels=4, image_size=16, hidden=32)

    # Full-precision path.
    model.set_use_quant(use_weight_quant=False, use_act_quant=False)
    out_fp = jax.block_until_ready(jax.jit(model.forward)(x))

    # Fake-quantized path (weights + activations).
    model.set_use_quant(use_weight_quant=True, use_act_quant=True)
    out_q = jax.block_until_ready(jax.jit(model.forward)(x))

    assert out_fp.shape == (2, 32), out_fp.shape
    assert out_q.shape == (2, 32), out_q.shape
    assert bool(jnp.all(jnp.isfinite(out_fp)))
    assert bool(jnp.all(jnp.isfinite(out_q)))
    # 8-bit fake quantization should only perturb the output slightly.
    assert float(jnp.max(jnp.abs(out_q - out_fp))) < 0.5
    print("KERNEL_OK")
</pallas_src>

<mosaic_0001>
module attributes {stable_mosaic.version = 11 : i64} {
  func.func @fused_quant_model_kernel(%arg0: memref<2x4x16x16xf32, #tpu.memory_space<vmem>>, %arg1: memref<192x128xf32, #tpu.memory_space<vmem>>, %arg2: memref<1x128xf32, #tpu.memory_space<vmem>>, %arg3: memref<2048x32xf32, #tpu.memory_space<vmem>>, %arg4: memref<1x32xf32, #tpu.memory_space<vmem>>, %arg5: memref<2x32xf32, #tpu.memory_space<vmem>>) attributes {dimension_semantics = [], scalar_prefetch = 0 : i64, scratch_operands = 0 : i64, tpu.core_type = #tpu.core_type<tc>} {
    %c0 = arith.constant 0 : index
    %c0_0 = arith.constant 0 : index
    %c0_1 = arith.constant 0 : index
    %c0_2 = arith.constant 0 : index
    %0 = vector.load %arg0[%c0, %c0_0, %c0_1, %c0_2] : memref<2x4x16x16xf32, #tpu.memory_space<vmem>>, vector<2x4x16x16xf32>
    %1 = vector.extract_strided_slice %0 {offsets = [0, 0, 0, 0], sizes = [2, 1, 16, 16], strides = [1, 1, 1, 1]} : vector<2x4x16x16xf32> to vector<2x1x16x16xf32>
    %2 = vector.shape_cast %1 : vector<2x1x16x16xf32> to vector<2x16x16xf32>
    %3 = vector.extract_strided_slice %0 {offsets = [0, 1, 0, 0], sizes = [2, 1, 16, 16], strides = [1, 1, 1, 1]} : vector<2x4x16x16xf32> to vector<2x1x16x16xf32>
    %4 = vector.shape_cast %3 : vector<2x1x16x16xf32> to vector<2x16x16xf32>
    %5 = vector.extract_strided_slice %0 {offsets = [0, 2, 0, 0], sizes = [2, 1, 16, 16], strides = [1, 1, 1, 1]} : vector<2x4x16x16xf32> to vector<2x1x16x16xf32>
    %6 = vector.shape_cast %5 : vector<2x1x16x16xf32> to vector<2x16x16xf32>
    %7 = vector.extract_strided_slice %0 {offsets = [0, 3, 0, 0], sizes = [2, 1, 16, 16], strides = [1, 1, 1, 1]} : vector<2x4x16x16xf32> to vector<2x1x16x16xf32>
    %8 = vector.shape_cast %7 : vector<2x1x16x16xf32> to vector<2x16x16xf32>
    %9 = tpu.concatenate %2, %4, %6, %8 in 2 : vector<2x16x16xf32>, vector<2x16x16xf32>, vector<2x16x16xf32>, vector<2x16x16xf32> -> vector<2x16x64xf32>
    %cst = arith.constant 0.000000e+00 : f32
    %10 = vector.broadcast %cst : f32 to vector<2x1x64xf32>
    %11 = tpu.concatenate %10, %9, %10 in 1 : vector<2x1x64xf32>, vector<2x16x64xf32>, vector<2x1x64xf32> -> vector<2x18x64xf32>
    %12 = vector.extract_strided_slice %11 {offsets = [0, 0, 0], sizes = [2, 16, 64], strides = [1, 1, 1]} : vector<2x18x64xf32> to vector<2x16x64xf32>
    %13 = vector.extract_strided_slice %11 {offsets = [0, 1, 0], sizes = [2, 16, 64], strides = [1, 1, 1]} : vector<2x18x64xf32> to vector<2x16x64xf32>
    %14 = vector.extract_strided_slice %11 {offsets = [0, 2, 0], sizes = [2, 16, 64], strides = [1, 1, 1]} : vector<2x18x64xf32> to vector<2x16x64xf32>
    %15 = tpu.concatenate %12, %13, %14 in 2 : vector<2x16x64xf32>, vector<2x16x64xf32>, vector<2x16x64xf32> -> vector<2x16x192xf32>
    %16 = vector.shape_cast %15 : vector<2x16x192xf32> to vector<32x192xf32>
    %c0_3 = arith.constant 0 : index
    %c0_4 = arith.constant 0 : index
    %17 = vector.load %arg1[%c0_3, %c0_4] : memref<192x128xf32, #tpu.memory_space<vmem>>, vector<192x128xf32>
    %cst_5 = arith.constant dense<0.000000e+00> : vector<32x128xf32>
    %18 = tpu.matmul %16, %17, %cst_5 {dimension_numbers = #tpu.dot_dimension_numbers<[1], [0], [0], [1], [0, 0, 1, 1], [], []>} : vector<32x192xf32>, vector<192x128xf32>, vector<32x128xf32> -> vector<32x128xf32>
    %c0_6 = arith.constant 0 : index
    %c0_7 = arith.constant 0 : index
    %19 = vector.load %arg2[%c0_6, %c0_7] : memref<1x128xf32, #tpu.memory_space<vmem>>, vector<1x128xf32>
    %20 = vector.broadcast %19 : vector<1x128xf32> to vector<32x128xf32>
    %21 = arith.addf %18, %20 : vector<32x128xf32>
    %cst_8 = arith.constant 0.000000e+00 : f32
    %22 = vector.broadcast %cst_8 : f32 to vector<32x128xf32>
    %23 = arith.maximumf %21, %22 : vector<32x128xf32>
    %24 = vector.shape_cast %23 : vector<32x128xf32> to vector<2x16x128xf32>
    %25 = vector.extract_strided_slice %24 {offsets = [0, 0, 0], sizes = [2, 1, 128], strides = [1, 1, 1]} : vector<2x16x128xf32> to vector<2x1x128xf32>
    %26 = vector.shape_cast %25 : vector<2x1x128xf32> to vector<2x128xf32>
    %27 = vector.extract_strided_slice %24 {offsets = [0, 1, 0], sizes = [2, 1, 128], strides = [1, 1, 1]} : vector<2x16x128xf32> to vector<2x1x128xf32>
    %28 = vector.shape_cast %27 : vector<2x1x128xf32> to vector<2x128xf32>
    %29 = vector.extract_strided_slice %24 {offsets = [0, 2, 0], sizes = [2, 1, 128], strides = [1, 1, 1]} : vector<2x16x128xf32> to vector<2x1x128xf32>
    %30 = vector.shape_cast %29 : vector<2x1x128xf32> to vector<2x128xf32>
    %31 = vector.extract_strided_slice %24 {offsets = [0, 3, 0], sizes = [2, 1, 128], strides = [1, 1, 1]} : vector<2x16x128xf32> to vector<2x1x128xf32>
    %32 = vector.shape_cast %31 : vector<2x1x128xf32> to vector<2x128xf32>
    %33 = vector.extract_strided_slice %24 {offsets = [0, 4, 0], sizes = [2, 1, 128], strides = [1, 1, 1]} : vector<2x16x128xf32> to vector<2x1x128xf32>
    %34 = vector.shape_cast %33 : vector<2x1x128xf32> to vector<2x128xf32>
    %35 = vector.extract_strided_slice %24 {offsets = [0, 5, 0], sizes = [2, 1, 128], strides = [1, 1, 1]} : vector<2x16x128xf32> to vector<2x1x128xf32>
    %36 = vector.shape_cast %35 : vector<2x1x128xf32> to vector<2x128xf32>
    %37 = vector.extract_strided_slice %24 {offsets = [0, 6, 0], sizes = [2, 1, 128], strides = [1, 1, 1]} : vector<2x16x128xf32> to vector<2x1x128xf32>
    %38 = vector.shape_cast %37 : vector<2x1x128xf32> to vector<2x128xf32>
    %39 = vector.extract_strided_slice %24 {offsets = [0, 7, 0], sizes = [2, 1, 128], strides = [1, 1, 1]} : vector<2x16x128xf32> to vector<2x1x128xf32>
    %40 = vector.shape_cast %39 : vector<2x1x128xf32> to vector<2x128xf32>
    %41 = vector.extract_strided_slice %24 {offsets = [0, 8, 0], sizes = [2, 1, 128], strides = [1, 1, 1]} : vector<2x16x128xf32> to vector<2x1x128xf32>
    %42 = vector.shape_cast %41 : vector<2x1x128xf32> to vector<2x128xf32>
    %43 = vector.extract_strided_slice %24 {offsets = [0, 9, 0], sizes = [2, 1, 128], strides = [1, 1, 1]} : vector<2x16x128xf32> to vector<2x1x128xf32>
    %44 = vector.shape_cast %43 : vector<2x1x128xf32> to vector<2x128xf32>
    %45 = vector.extract_strided_slice %24 {offsets = [0, 10, 0], sizes = [2, 1, 128], strides = [1, 1, 1]} : vector<2x16x128xf32> to vector<2x1x128xf32>
    %46 = vector.shape_cast %45 : vector<2x1x128xf32> to vector<2x128xf32>
    %47 = vector.extract_strided_slice %24 {offsets = [0, 11, 0], sizes = [2, 1, 128], strides = [1, 1, 1]} : vector<2x16x128xf32> to vector<2x1x128xf32>
    %48 = vector.shape_cast %47 : vector<2x1x128xf32> to vector<2x128xf32>
    %49 = vector.extract_strided_slice %24 {offsets = [0, 12, 0], sizes = [2, 1, 128], strides = [1, 1, 1]} : vector<2x16x128xf32> to vector<2x1x128xf32>
    %50 = vector.shape_cast %49 : vector<2x1x128xf32> to vector<2x128xf32>
    %51 = vector.extract_strided_slice %24 {offsets = [0, 13, 0], sizes = [2, 1, 128], strides = [1, 1, 1]} : vector<2x16x128xf32> to vector<2x1x128xf32>
    %52 = vector.shape_cast %51 : vector<2x1x128xf32> to vector<2x128xf32>
    %53 = vector.extract_strided_slice %24 {offsets = [0, 14, 0], sizes = [2, 1, 128], strides = [1, 1, 1]} : vector<2x16x128xf32> to vector<2x1x128xf32>
    %54 = vector.shape_cast %53 : vector<2x1x128xf32> to vector<2x128xf32>
    %55 = vector.extract_strided_slice %24 {offsets = [0, 15, 0], sizes = [2, 1, 128], strides = [1, 1, 1]} : vector<2x16x128xf32> to vector<2x1x128xf32>
    %56 = vector.shape_cast %55 : vector<2x1x128xf32> to vector<2x128xf32>
    %57 = tpu.concatenate %26, %28, %30, %32, %34, %36, %38, %40, %42, %44, %46, %48, %50, %52, %54, %56 in 1 : vector<2x128xf32>, vector<2x128xf32>, vector<2x128xf32>, vector<2x128xf32>, vector<2x128xf32>, vector<2x128xf32>, vector<2x128xf32>, vector<2x128xf32>, vector<2x128xf32>, vector<2x128xf32>, vector<2x128xf32>, vector<2x128xf32>, vector<2x128xf32>, vector<2x128xf32>, vector<2x128xf32>, vector<2x128xf32> -> vector<2x2048xf32>
    %c0_9 = arith.constant 0 : index
    %c0_10 = arith.constant 0 : index
    %58 = vector.load %arg3[%c0_9, %c0_10] : memref<2048x32xf32, #tpu.memory_space<vmem>>, vector<2048x32xf32>
    %cst_11 = arith.constant dense<0.000000e+00> : vector<2x32xf32>
    %59 = tpu.matmul %57, %58, %cst_11 {dimension_numbers = #tpu.dot_dimension_numbers<[1], [0], [0], [1], [0, 0, 1, 1], [], []>} : vector<2x2048xf32>, vector<2048x32xf32>, vector<2x32xf32> -> vector<2x32xf32>
    %c0_12 = arith.constant 0 : index
    %c0_13 = arith.constant 0 : index
    %60 = vector.load %arg4[%c0_12, %c0_13] : memref<1x32xf32, #tpu.memory_space<vmem>>, vector<1x32xf32>
    %61 = vector.broadcast %60 : vector<1x32xf32> to vector<2x32xf32>
    %62 = arith.addf %59, %61 : vector<2x32xf32>
    %c0_14 = arith.constant 0 : index
    %c0_15 = arith.constant 0 : index
    %63 = vector.load %arg5[%c0_14, %c0_15] : memref<2x32xf32, #tpu.memory_space<vmem>>, vector<2x32xf32>
    tpu.vector_store %arg5[%c0_14, %c0_15], %62 {strides = array<i32>} : memref<2x32xf32, #tpu.memory_space<vmem>>, vector<2x32xf32>,
    return
  }
}

</mosaic_0001>

<llo_original>
// kernel: forward.1
$region0: #{forward.1}
  #allocation0 [shape = 'u32[]', space=smem, size = 0x4, offset = 0x4, fixed_abs, tag = 'smem constant byte address 0x4 - core index']
  #allocation1 [shape = 'u32[72,128]{1,0:T(1,128)}', space=vmem, size = 0x9000, scoped, tag = 'internal scratch']
  %s0 = inlined_call_operand.hbm [shape: f32[2,4,16,16], index: 0, kind: input, shape index: {}]
  %s1 = inlined_call_operand.hbm [shape: f32[192,128], index: 1, kind: input, shape index: {}]
  %s2 = inlined_call_operand.hbm [shape: f32[1,128], index: 2, kind: input, shape index: {}]
  %s3 = inlined_call_operand.hbm [shape: f32[2048,32], index: 3, kind: input, shape index: {}]
  %s4 = inlined_call_operand.vmem [shape: f32[1,32], index: 4, kind: input, shape index: {}]
  %s5 = inlined_call_operand.hbm [shape: f32[2,32], index: 5, kind: output, shape index: {}]
  %s6 = sld [smem:[#allocation0]]
  $region46: #{forward.1} parent=0
    _
  %s8 = ssub.s32 1, %s6
  %s9 = scalar_select 0, %s8, %s6
  $region1: #{forward.1} parent=0
    #allocation2 [shape = 'u8[65536]{0}', space=vmem, size = 0x10000, scoped, tag = 'input window, operand 0, single buffered']
    #allocation3 [shape = 's32[1]{0}', space=sflag, size = 0x4, scoped, tag = 'scoped memory for forward.1']
    #allocation4 [shape = 's32[1]{0}', space=sflag, size = 0x4, scoped, tag = 'scoped memory for forward.1']
    #allocation5 [shape = 'u8[98304]{0}', space=vmem, size = 0x18000, scoped, tag = 'input window, operand 1, single buffered']
    #allocation6 [shape = 's32[1]{0}', space=sflag, size = 0x4, scoped, tag = 'scoped memory for forward.1']
    #allocation7 [shape = 'u8[512]{0}', space=vmem, size = 0x400, scoped, tag = 'input window, operand 2, single buffered']
    #allocation8 [shape = 'u8[1048576]{0}', space=vmem, size = 0x100000, scoped, tag = 'input window, operand 3, single buffered']
    #allocation9 [shape = 's32[1]{0}', space=sflag, size = 0x4, scoped, tag = 'scoped memory for forward.1']
    #allocation10 [shape = 'u8[1024]{0}', space=vmem, size = 0x400, scoped, tag = 'output window, operand 0, single buffered']
    %10 = vsyncpa [#allocation3], 0
    %11 = vsyncpa [#allocation6], 0
    %12 = vsyncpa [#allocation9], 0
    %13 = vsyncpa [#allocation4], 0
    // Predicated region
    $region2: #{forward.1} parent=1 // pred_check
      _
    $region3: #{forward.1} parent=1 // pred_check_branch
      %15 = sbr.rel (0) target = $region5
    $region4: #{forward.1} parent=1 // pred_region
      %17 = vsyncadd [#allocation3], 0
      %s18 = sshll.u32 %s0, 4
      %s19 = int_to_ptr.hbm [resolvable:$true] %s18
      %s20 = sshll.u32 [#allocation2], 4
      %s21 = int_to_ptr.vmem [resolvable:$true] %s20
      %26 = dma.hbm_to_vmem [thread:$0]  %s19, 2048, %s21, [#allocation3], 128, 128, 8
    $region5: #{forward.1} parent=1 // pred_fallthru
      _
    // Predicated region
    $region6: #{forward.1} parent=1 // pred_check
      _
    $region7: #{forward.1} parent=1 // pred_check_branch
      %28 = sbr.rel (0) target = $region9
    $region8: #{forward.1} parent=1 // pred_region
      %30 = vsyncadd [#allocation6], 0
      %s31 = sshll.u32 %s1, 4
      %s32 = int_to_ptr.hbm [resolvable:$true] %s31
      %s33 = sshll.u32 [#allocation5], 4
      %s34 = int_to_ptr.vmem [resolvable:$true] %s33
      %39 = dma.hbm_to_vmem [thread:$0]  %s32, 3072, %s34, [#allocation6], 128, 128, 8
    $region9: #{forward.1} parent=1 // pred_fallthru
      _
    // Predicated region
    $region10: #{forward.1} parent=1 // pred_check
      _
    $region11: #{forward.1} parent=1 // pred_check_branch
      %41 = sbr.rel (0) target = $region13
    $region12: #{forward.1} parent=1 // pred_region
      %43 = vsyncadd [#allocation6], 0
      %s45 = sshll.u32 %s2, 4
      %s46 = int_to_ptr.hbm [resolvable:$true] %s45
      %s47 = sshll.u32 [#allocation7], 4
      %s48 = int_to_ptr.vmem [resolvable:$true] %s47
      %50 = dma.hbm_to_vmem [thread:$0]  %s46, 16, %s48, [#allocation6]
    $region13: #{forward.1} parent=1 // pred_fallthru
      _
    // Predicated region
    $region14: #{forward.1} parent=1 // pred_check
      _
    $region15: #{forward.1} parent=1 // pred_check_branch
      %52 = sbr.rel (0) target = $region17
    $region16: #{forward.1} parent=1 // pred_region
      %54 = vsyncadd [#allocation9], 0
      %s55 = sshll.u32 %s3, 4
      %s56 = int_to_ptr.hbm [resolvable:$true] %s55
      %s57 = sshll.u32 [#allocation8], 4
      %s58 = int_to_ptr.vmem [resolvable:$true] %s57
      %63 = dma.hbm_to_vmem [thread:$0]  %s56, 32768, %s58, [#allocation9], 128, 128, 8
    $region17: #{forward.1} parent=1 // pred_fallthru
      _
    // Predicated region
    $region18: #{forward.1} parent=1 // pred_check
      _
    $region19: #{forward.1} parent=1 // pred_check_branch
      %65 = sbr.rel (0) target = $region21
    $region20: #{forward.1} parent=1 // pred_region
      _
    $region21: #{forward.1} parent=1 // pred_fallthru
      _
    // Predicated region
    $region22: #{forward.1} parent=1 // pred_check
      _
    $region23: #{forward.1} parent=1 // pred_check_branch
      %67 = sbr.rel (0) target = $region25
    $region24: #{forward.1} parent=1 // pred_region
      %69 = dma.done [#allocation3], 2048
    $region25: #{forward.1} parent=1 // pred_fallthru
      _
    // Predicated region
    $region26: #{forward.1} parent=1 // pred_check
      _
    $region27: #{forward.1} parent=1 // pred_check_branch
      %71 = sbr.rel (0) target = $region29
    $region28: #{forward.1} parent=1 // pred_region
      %73 = dma.done [#allocation6], 3072
    $region29: #{forward.1} parent=1 // pred_fallthru
      _
    // Predicated region
    $region30: #{forward.1} parent=1 // pred_check
      _
    $region31: #{forward.1} parent=1 // pred_check_branch
      %75 = sbr.rel (0) target = $region33
    $region32: #{forward.1} parent=1 // pred_region
      %77 = dma.done [#allocation6], 16
    $region33: #{forward.1} parent=1 // pred_fallthru
      _
    // Predicated region
    $region34: #{forward.1} parent=1 // pred_check
      _
    $region35: #{forward.1} parent=1 // pred_check_branch
      %79 = sbr.rel (0) target = $region37
    $region36: #{forward.1} parent=1 // pred_region
      %81 = dma.done [#allocation9], 32768
    $region37: #{forward.1} parent=1 // pred_fallthru
      _
    %v82 = vld [vmem:[#allocation2] sm:$0xff]
    %v83 = vld [vmem:[#allocation2 + $0x8] sm:$0xff]
    %v84 = vld [vmem:[#allocation2 + $0x10] sm:$0xff]
    %v85 = vld [vmem:[#allocation2 + $0x18] sm:$0xff]
    %v86 = vld [vmem:[#allocation2 + $0x20] sm:$0xff]
    %v87 = vld [vmem:[#allocation2 + $0x28] sm:$0xff]
    %v88 = vld [vmem:[#allocation2 + $0x30] sm:$0xff]
    %v89 = vld [vmem:[#allocation2 + $0x38] sm:$0xff]
    %v90 = vld [vmem:[#allocation2 + $0x40] sm:$0xff]
    %v91 = vld [vmem:[#allocation2 + $0x48] sm:$0xff]
    %v92 = vld [vmem:[#allocation2 + $0x50] sm:$0xff]
    %v93 = vld [vmem:[#allocation2 + $0x58] sm:$0xff]
    %v94 = vld [vmem:[#allocation2 + $0x60] sm:$0xff]
    %v95 = vld [vmem:[#allocation2 + $0x68] sm:$0xff]
    %v96 = vld [vmem:[#allocation2 + $0x70] sm:$0xff]
    %v97 = vld [vmem:[#allocation2 + $0x78] sm:$0xff]
    %102 = vrot.lane.b32.xlu0 %v84, 16
    %v103 = vpop.permute.xlu0 %102
    %104 = vrot.lane.b32.xlu0 %v85, 16
    %v105 = vpop.permute.xlu0 %104
    %106 = vrot.lane.b32.xlu0 %v92, 16
    %v107 = vpop.permute.xlu0 %106
    %108 = vrot.lane.b32.xlu0 %v93, 16
    %v109 = vpop.permute.xlu0 %108
    %118 = vrot.lane.b32.xlu0 %v86, 32
    %v119 = vpop.permute.xlu0 %118
    %120 = vrot.lane.b32.xlu0 %v87, 32
    %v121 = vpop.permute.xlu0 %120
    %122 = vrot.lane.b32.xlu0 %v94, 32
    %v123 = vpop.permute.xlu0 %122
    %124 = vrot.lane.b32.xlu0 %v95, 32
    %v125 = vpop.permute.xlu0 %124
    %134 = vrot.lane.b32.xlu0 %v88, 48
    %v135 = vpop.permute.xlu0 %134
    %136 = vrot.lane.b32.xlu0 %v89, 48
    %v137 = vpop.permute.xlu0 %136
    %138 = vrot.lane.b32.xlu0 %v96, 48
    %v139 = vpop.permute.xlu0 %138
    %140 = vrot.lane.b32.xlu0 %v97, 48
    %v141 = vpop.permute.xlu0 %140
    %vm146 = vcmask 130048
    %v147 = vsel %vm146, %v82, %v103
    %v148 = vsel %vm146, %v83, %v105
    %v149 = vsel %vm146, %v90, %v107
    %v150 = vsel %vm146, %v91, %v109
    %vm151 = vcmask 261120
    %v152 = vsel %vm151, %v147, %v119
    %v153 = vsel %vm151, %v148, %v121
    %v154 = vsel %vm151, %v149, %v123
    %v155 = vsel %vm151, %v150, %v125
    %vm156 = vcmask 392192
    %v157 = vsel %vm156, %v152, %v135
    %v158 = vsel %vm156, %v153, %v137
    %v159 = vsel %vm156, %v154, %v139
    %v160 = vsel %vm156, %v155, %v141
    %vm165 = vcmask 1040384
    %v166 = vrot.slane %v157, 7
    %v167 = vrot.slane %v158, 7
    %v168 = vsel %vm165, %v166, %v167
    %v169 = vrot.slane %v159, 7
    %v170 = vrot.slane %v160, 7
    %v171 = vsel %vm165, %v169, %v170
    %v178 = vsel %vm165, 0.0, %v166
    %v179 = vsel %vm165, 0.0, %v169
    %v180 = vsel %vm165, %v167, 0.0
    %v181 = vsel %vm165, %v170, 0.0
    %vm186 = vcmask 1046528
    %v187 = vrot.slane %v178, 1
    %v188 = vrot.slane %v168, 1
    %v189 = vsel %vm186, %v187, %v188
    %v190 = vrot.slane %v180, 1
    %v191 = vsel %vm186, %v188, %v190
    %v192 = vrot.slane %v179, 1
    %v193 = vrot.slane %v171, 1
    %v194 = vsel %vm186, %v192, %v193
    %v195 = vrot.slane %v181, 1
    %v196 = vsel %vm186, %v193, %v195
    %197 = vrot.lane.b32.xlu0 %v189, 64
    %v198 = vpop.permute.xlu0 %197
    %199 = vrot.lane.b32.xlu0 %v191, 64
    %v200 = vpop.permute.xlu0 %199
    %201 = vrot.lane.b32.xlu0 %v194, 64
    %v202 = vpop.permute.xlu0 %201
    %203 = vrot.lane.b32.xlu0 %v196, 64
    %v204 = vpop.permute.xlu0 %203
    %vm209 = vcmask 1045504
    %v210 = vrot.slane %v178, 2
    %v211 = vrot.slane %v168, 2
    %v212 = vsel %vm209, %v210, %v211
    %v213 = vrot.slane %v180, 2
    %v214 = vsel %vm209, %v211, %v213
    %v215 = vrot.slane %v179, 2
    %v216 = vrot.slane %v171, 2
    %v217 = vsel %vm209, %v215, %v216
    %v218 = vrot.slane %v181, 2
    %v219 = vsel %vm209, %v216, %v218
    %vm220 = vcmask 523264
    %v221 = vsel %vm220, %v178, %v198
    %v222 = vsel %vm220, %v168, %v200
    %v223 = vsel %vm220, %v179, %v202
    %v224 = vsel %vm220, %v171, %v204
    %v225 = vld [vmem:[#allocation5] sm:$0xff]
    %v226 = vld [vmem:[#allocation5 + $0x8] sm:$0xff]
    %v227 = vld [vmem:[#allocation5 + $0x10] sm:$0xff]
    %v228 = vld [vmem:[#allocation5 + $0x18] sm:$0xff]
    %v229 = vld [vmem:[#allocation5 + $0x20] sm:$0xff]
    %v230 = vld [vmem:[#allocation5 + $0x28] sm:$0xff]
    %v231 = vld [vmem:[#allocation5 + $0x30] sm:$0xff]
    %v232 = vld [vmem:[#allocation5 + $0x38] sm:$0xff]
    %v233 = vld [vmem:[#allocation5 + $0x40] sm:$0xff]
    %v234 = vld [vmem:[#allocation5 + $0x48] sm:$0xff]
    %v235 = vld [vmem:[#allocation5 + $0x50] sm:$0xff]
    %v236 = vld [vmem:[#allocation5 + $0x58] sm:$0xff]
    %v237 = vld [vmem:[#allocation5 + $0x60] sm:$0xff]
    %v238 = vld [vmem:[#allocation5 + $0x68] sm:$0xff]
    %v239 = vld [vmem:[#allocation5 + $0x70] sm:$0xff]
    %v240 = vld [vmem:[#allocation5 + $0x78] sm:$0xff]
    %v241 = vld [vmem:[#allocation5 + $0x80] sm:$0xff]
    %v242 = vld [vmem:[#allocation5 + $0x88] sm:$0xff]
    %v243 = vld [vmem:[#allocation5 + $0x90] sm:$0xff]
    %v244 = vld [vmem:[#allocation5 + $0x98] sm:$0xff]
    %v245 = vld [vmem:[#allocation5 + $0xa0] sm:$0xff]
    %v246 = vld [vmem:[#allocation5 + $0xa8] sm:$0xff]
    %v247 = vld [vmem:[#allocation5 + $0xb0] sm:$0xff]
    %v248 = vld [vmem:[#allocation5 + $0xb8] sm:$0xff]
    %v249 = vld [vmem:[#allocation7] sm:$0x1]
    %v251 = vperm.slane %v249, 0
    %v253 = vsel %vm220, %v212, 0
    %v255 = vsel %vm220, %v214, 0
    %v257 = vsel %vm220, %v217, 0
    %v259 = vsel %vm220, %v219, 0
    %261 = vmatpush.msra.mxu0 %v240
    %262 = vmatpush.msra.mxu0 %v239
    %263 = vmatpush.msra.mxu0 %v238
    %264 = vmatpush.msra.mxu0 %v237
    %265 = vmatpush.msra.mxu0 %v236
    %266 = vmatpush.msra.mxu0 %v235
    %267 = vmatpush.msra.mxu0 %v234
    %268 = vmatpush.msra.mxu0 %v233
    %269 = vmatpush.msra.mxu0 %v232
    %270 = vmatpush.msra.mxu0 %v231
    %271 = vmatpush.msra.mxu0 %v230
    %272 = vmatpush.msra.mxu0 %v229
    %273 = vmatpush.msra.mxu0 %v228
    %274 = vmatpush.msra.mxu0 %v227
    %275 = vmatpush.msra.mxu0 %v226
    %276 = vmatpush.msra.mxu0 %v225
    %277 = vmatmul.f32.gmra.mxu0 %v221
    %v278 = vpop.f32.mrf.mxu0
    %v279 = vadd.f32 %v251, %v278
    %280 = vmatmul.f32.gmra.mxu0 %v222
    %v281 = vpop.f32.mrf.mxu0
    %v282 = vadd.f32 %v251, %v281
    %283 = vmatmul.f32.gmra.mxu0 %v223
    %v284 = vpop.f32.mrf.mxu0
    %v285 = vadd.f32 %v251, %v284
    %286 = vmatmul.f32.gmra.mxu0 %v224
    %v287 = vpop.f32.mrf.mxu0
    %v288 = vadd.f32 %v251, %v287
    %289 = vdwg.mxu0
    %290 = vmatpush.msra.mxu0 0.0
    %291 = vmatpush.msra.mxu0 0.0
    %292 = vmatpush.msra.mxu0 0.0
    %293 = vmatpush.msra.mxu0 0.0
    %294 = vmatpush.msra.mxu0 0.0
    %295 = vmatpush.msra.mxu0 0.0
    %296 = vmatpush.msra.mxu0 0.0
    %297 = vmatpush.msra.mxu0 0.0
    %298 = vmatpush.msra.mxu0 %v248
    %299 = vmatpush.msra.mxu0 %v247
    %300 = vmatpush.msra.mxu0 %v246
    %301 = vmatpush.msra.mxu0 %v245
    %302 = vmatpush.msra.mxu0 %v244
    %303 = vmatpush.msra.mxu0 %v243
    %304 = vmatpush.msra.mxu0 %v242
    %305 = vmatpush.msra.mxu0 %v241
    %306 = vmatmul.f32.gmra.mxu0 %v253
    %v307 = vpop.f32.mrf.mxu0
    %v308 = vadd.f32 %v279, %v307
    %309 = vmatmul.f32.gmra.mxu0 %v255
    %v310 = vpop.f32.mrf.mxu0
    %v311 = vadd.f32 %v282, %v310
    %312 = vmatmul.f32.gmra.mxu0 %v257
    %v313 = vpop.f32.mrf.mxu0
    %v314 = vadd.f32 %v285, %v313
    %315 = vmatmul.f32.gmra.mxu0 %v259
    %v316 = vpop.f32.mrf.mxu0
    %v317 = vadd.f32 %v288, %v316
    %318 = vdwg.mxu0
    %v319 = vmax.f32 %v308, 0.0
    %v320 = vmax.f32 %v311, 0.0
    %v321 = vmax.f32 %v314, 0.0
    %v322 = vmax.f32 %v317, 0.0
    %v325 = vrot.slane %v321, 7
    %vm326 = vcmask 1041409
    %v327 = vsel %vm326, %v325, %v319
    %v329 = vrot.slane %v319, 1
    %v330 = vsel %vm326, %v321, %v329
    %v332 = vrot.slane %v319, 2
    %v333 = vrot.slane %v321, 1
    %v334 = vsel %vm326, %v333, %v332
    %v336 = vrot.slane %v319, 3
    %v337 = vrot.slane %v321, 2
    %v338 = vsel %vm326, %v337, %v336
    %v340 = vrot.slane %v319, 4
    %v341 = vrot.slane %v321, 3
    %v342 = vsel %vm326, %v341, %v340
    %v344 = vrot.slane %v319, 5
    %v345 = vrot.slane %v321, 4
    %v346 = vsel %vm326, %v345, %v344
    %v348 = vrot.slane %v319, 6
    %v349 = vrot.slane %v321, 5
    %v350 = vsel %vm326, %v349, %v348
    %v352 = vrot.slane %v319, 7
    %v353 = vrot.slane %v321, 6
    %v354 = vsel %vm326, %v353, %v352
    %v358 = vrot.slane %v322, 7
    %v359 = vsel %vm326, %v358, %v320
    %v361 = vrot.slane %v320, 1
    %v362 = vsel %vm326, %v322, %v361
    %v364 = vrot.slane %v320, 2
    %v365 = vrot.slane %v322, 1
    %v366 = vsel %vm326, %v365, %v364
    %v368 = vrot.slane %v320, 3
    %v369 = vrot.slane %v322, 2
    %v370 = vsel %vm326, %v369, %v368
    %v372 = vrot.slane %v320, 4
    %v373 = vrot.slane %v322, 3
    %v374 = vsel %vm326, %v373, %v372
    %v376 = vrot.slane %v320, 5
    %v377 = vrot.slane %v322, 4
    %v378 = vsel %vm326, %v377, %v376
    %v380 = vrot.slane %v320, 6
    %v381 = vrot.slane %v322, 5
    %v382 = vsel %vm326, %v381, %v380
    %v384 = vrot.slane %v320, 7
    %v385 = vrot.slane %v322, 6
    %v386 = vsel %vm326, %v385, %v384
    %v388 = vld [vmem:[#allocation8] sm:$0xff]
    %v389 = vld [vmem:[#allocation8 + $0x8] sm:$0xff]
    %v390 = vld [vmem:[#allocation8 + $0x10] sm:$0xff]
    %v391 = vld [vmem:[#allocation8 + $0x18] sm:$0xff]
    %v392 = vld [vmem:[#allocation8 + $0x20] sm:$0xff]
    %v393 = vld [vmem:[#allocation8 + $0x28] sm:$0xff]
    %v394 = vld [vmem:[#allocation8 + $0x30] sm:$0xff]
    %v395 = vld [vmem:[#allocation8 + $0x38] sm:$0xff]
    %v396 = vld [vmem:[#allocation8 + $0x40] sm:$0xff]
    %v397 = vld [vmem:[#allocation8 + $0x48] sm:$0xff]
    %v398 = vld [vmem:[#allocation8 + $0x50] sm:$0xff]
    %v399 = vld [vmem:[#allocation8 + $0x58] sm:$0xff]
    %v400 = vld [vmem:[#allocation8 + $0x60] sm:$0xff]
    %v401 = vld [vmem:[#allocation8 + $0x68] sm:$0xff]
    %v402 = vld [vmem:[#allocation8 + $0x70] sm:$0xff]
    %v403 = vld [vmem:[#allocation8 + $0x78] sm:$0xff]
    %v404 = vld [vmem:[#allocation8 + $0x80] sm:$0xff]
    %v405 = vld [vmem:[#allocation8 + $0x88] sm:$0xff]
    %v406 = vld [vmem:[#allocation8 + $0x90] sm:$0xff]
    %v407 = vld [vmem:[#allocation8 + $0x98] sm:$0xff]
    %v408 = vld [vmem:[#allocation8 + $0xa0] sm:$0xff]
    %v409 = vld [vmem:[#allocation8 + $0xa8] sm:$0xff]
    %v410 = vld [vmem:[#allocation8 + $0xb0] sm:$0xff]
    %v411 = vld [vmem:[#allocation8 + $0xb8] sm:$0xff]
    %v412 = vld [vmem:[#allocation8 + $0xc0] sm:$0xff]
    %v413 = vld [vmem:[#allocation8 + $0xc8] sm:$0xff]
    %v414 = vld [vmem:[#allocation8 + $0xd0] sm:$0xff]
    %v415 = vld [vmem:[#allocation8 + $0xd8] sm:$0xff]
    %v416 = vld [vmem:[#allocation8 + $0xe0] sm:$0xff]
    %v417 = vld [vmem:[#allocation8 + $0xe8] sm:$0xff]
    %v418 = vld [vmem:[#allocation8 + $0xf0] sm:$0xff]
    %v419 = vld [vmem:[#allocation8 + $0xf8] sm:$0xff]
    %v420 = vld [vmem:[#allocation8 + $0x100] sm:$0xff]
    %v421 = vld [vmem:[#allocation8 + $0x108] sm:$0xff]
    %v422 = vld [vmem:[#allocation8 + $0x110] sm:$0xff]
    %v423 = vld [vmem:[#allocation8 + $0x118] sm:$0xff]
    %v424 = vld [vmem:[#allocation8 + $0x120] sm:$0xff]
    %v425 = vld [vmem:[#allocation8 + $0x128] sm:$0xff]
    %v426 = vld [vmem:[#allocation8 + $0x130] sm:$0xff]
    %v427 = vld [vmem:[#allocation8 + $0x138] sm:$0xff]
    %v428 = vld [vmem:[#allocation8 + $0x140] sm:$0xff]
    %v429 = vld [vmem:[#allocation8 + $0x148] sm:$0xff]
    %v430 = vld [vmem:[#allocation8 + $0x150] sm:$0xff]
    %v431 = vld [vmem:[#allocation8 + $0x158] sm:$0xff]
    %v432 = vld [vmem:[#allocation8 + $0x160] sm:$0xff]
    %v433 = vld [vmem:[#allocation8 + $0x168] sm:$0xff]
    %v434 = vld [vmem:[#allocation8 + $0x170] sm:$0xff]
    %v435 = vld [vmem:[#allocation8 + $0x178] sm:$0xff]
    %v436 = vld [vmem:[#allocation8 + $0x180] sm:$0xff]
    %v437 = vld [vmem:[#allocation8 + $0x188] sm:$0xff]
    %v438 = vld [vmem:[#allocation8 + $0x190] sm:$0xff]
    %v439 = vld [vmem:[#allocation8 + $0x198] sm:$0xff]
    %v440 = vld [vmem:[#allocation8 + $0x1a0] sm:$0xff]
    %v441 = vld [vmem:[#allocation8 + $0x1a8] sm:$0xff]
    %v442 = vld [vmem:[#allocation8 + $0x1b0] sm:$0xff]
    %v443 = vld [vmem:[#allocation8 + $0x1b8] sm:$0xff]
    %v444 = vld [vmem:[#allocation8 + $0x1c0] sm:$0xff]
    %v445 = vld [vmem:[#allocation8 + $0x1c8] sm:$0xff]
    %v446 = vld [vmem:[#allocation8 + $0x1d0] sm:$0xff]
    %v447 = vld [vmem:[#allocation8 + $0x1d8] sm:$0xff]
    %v448 = vld [vmem:[#allocation8 + $0x1e0] sm:$0xff]
    %v449 = vld [vmem:[#allocation8 + $0x1e8] sm:$0xff]
    %v450 = vld [vmem:[#allocation8 + $0x1f0] sm:$0xff]
    %v451 = vld [vmem:[#allocation8 + $0x1f8] sm:$0xff]
    %v452 = vld [vmem:[#allocation8 + $0x200] sm:$0xff]
    %v453 = vld [vmem:[#allocation8 + $0x208] sm:$0xff]
    %v454 = vld [vmem:[#allocation8 + $0x210] sm:$0xff]
    %v455 = vld [vmem:[#allocation8 + $0x218] sm:$0xff]
    %v456 = vld [vmem:[#allocation8 + $0x220] sm:$0xff]
    %v457 = vld [vmem:[#allocation8 + $0x228] sm:$0xff]
    %v458 = vld [vmem:[#allocation8 + $0x230] sm:$0xff]
    %v459 = vld [vmem:[#allocation8 + $0x238] sm:$0xff]
    %v460 = vld [vmem:[#allocation8 + $0x240] sm:$0xff]
    %v461 = vld [vmem:[#allocation8 + $0x248] sm:$0xff]
    %v462 = vld [vmem:[#allocation8 + $0x250] sm:$0xff]
    %v463 = vld [vmem:[#allocation8 + $0x258] sm:$0xff]
    %v464 = vld [vmem:[#allocation8 + $0x260] sm:$0xff]
    %v465 = vld [vmem:[#allocation8 + $0x268] sm:$0xff]
    %v466 = vld [vmem:[#allocation8 + $0x270] sm:$0xff]
    %v467 = vld [vmem:[#allocation8 + $0x278] sm:$0xff]
    %v468 = vld [vmem:[#allocation8 + $0x280] sm:$0xff]
    %v469 = vld [vmem:[#allocation8 + $0x288] sm:$0xff]
    %v470 = vld [vmem:[#allocation8 + $0x290] sm:$0xff]
    %v471 = vld [vmem:[#allocation8 + $0x298] sm:$0xff]
    %v472 = vld [vmem:[#allocation8 + $0x2a0] sm:$0xff]
    %v473 = vld [vmem:[#allocation8 + $0x2a8] sm:$0xff]
    %v474 = vld [vmem:[#allocation8 + $0x2b0] sm:$0xff]
    %v475 = vld [vmem:[#allocation8 + $0x2b8] sm:$0xff]
    %v476 = vld [vmem:[#allocation8 + $0x2c0] sm:$0xff]
    %v477 = vld [vmem:[#allocation8 + $0x2c8] sm:$0xff]
    %v478 = vld [vmem:[#allocation8 + $0x2d0] sm:$0xff]
    %v479 = vld [vmem:[#allocation8 + $0x2d8] sm:$0xff]
    %v480 = vld [vmem:[#allocation8 + $0x2e0] sm:$0xff]
    %v481 = vld [vmem:[#allocation8 + $0x2e8] sm:$0xff]
    %v482 = vld [vmem:[#allocation8 + $0x2f0] sm:$0xff]
    %v483 = vld [vmem:[#allocation8 + $0x2f8] sm:$0xff]
    %v484 = vld [vmem:[#allocation8 + $0x300] sm:$0xff]
    %v485 = vld [vmem:[#allocation8 + $0x308] sm:$0xff]
    %v486 = vld [vmem:[#allocation8 + $0x310] sm:$0xff]
    %v487 = vld [vmem:[#allocation8 + $0x318] sm:$0xff]
    %v488 = vld [vmem:[#allocation8 + $0x320] sm:$0xff]
    %v489 = vld [vmem:[#allocation8 + $0x328] sm:$0xff]
    %v490 = vld [vmem:[#allocation8 + $0x330] sm:$0xff]
    %v491 = vld [vmem:[#allocation8 + $0x338] sm:$0xff]
    %v492 = vld [vmem:[#allocation8 + $0x340] sm:$0xff]
    %v493 = vld [vmem:[#allocation8 + $0x348] sm:$0xff]
    %v494 = vld [vmem:[#allocation8 + $0x350] sm:$0xff]
    %v495 = vld [vmem:[#allocation8 + $0x358] sm:$0xff]
    %v496 = vld [vmem:[#allocation8 + $0x360] sm:$0xff]
    %v497 = vld [vmem:[#allocation8 + $0x368] sm:$0xff]
    %v498 = vld [vmem:[#allocation8 + $0x370] sm:$0xff]
    %v499 = vld [vmem:[#allocation8 + $0x378] sm:$0xff]
    %v500 = vld [vmem:[#allocation8 + $0x380] sm:$0xff]
    %v501 = vld [vmem:[#allocation8 + $0x388] sm:$0xff]
    %v502 = vld [vmem:[#allocation8 + $0x390] sm:$0xff]
    %v503 = vld [vmem:[#allocation8 + $0x398] sm:$0xff]
    %v504 = vld [vmem:[#allocation8 + $0x3a0] sm:$0xff]
    %v505 = vld [vmem:[#allocation8 + $0x3a8] sm:$0xff]
    %v506 = vld [vmem:[#allocation8 + $0x3b0] sm:$0xff]
    %v507 = vld [vmem:[#allocation8 + $0x3b8] sm:$0xff]
    %v508 = vld [vmem:[#allocation8 + $0x3c0] sm:$0xff]
    %v509 = vld [vmem:[#allocation8 + $0x3c8] sm:$0xff]
    %v510 = vld [vmem:[#allocation8 + $0x3d0] sm:$0xff]
    %v511 = vld [vmem:[#allocation8 + $0x3d8] sm:$0xff]
    %v512 = vld [vmem:[#allocation8 + $0x3e0] sm:$0xff]
    %v513 = vld [vmem:[#allocation8 + $0x3e8] sm:$0xff]
    %v514 = vld [vmem:[#allocation8 + $0x3f0] sm:$0xff]
    %v515 = vld [vmem:[#allocation8 + $0x3f8] sm:$0xff]
    %v516 = vld [vmem:[#allocation8 + $0x400] sm:$0xff]
    %v517 = vld [vmem:[#allocation8 + $0x408] sm:$0xff]
    %v518 = vld [vmem:[#allocation8 + $0x410] sm:$0xff]
    %v519 = vld [vmem:[#allocation8 + $0x418] sm:$0xff]
    %v520 = vld [vmem:[#allocation8 + $0x420] sm:$0xff]
    %v521 = vld [vmem:[#allocation8 + $0x428] sm:$0xff]
    %v522 = vld [vmem:[#allocation8 + $0x430] sm:$0xff]
    %v523 = vld [vmem:[#allocation8 + $0x438] sm:$0xff]
    %v524 = vld [vmem:[#allocation8 + $0x440] sm:$0xff]
    %v525 = vld [vmem:[#allocation8 + $0x448] sm:$0xff]
    %v526 = vld [vmem:[#allocation8 + $0x450] sm:$0xff]
    %v527 = vld [vmem:[#allocation8 + $0x458] sm:$0xff]
    %v528 = vld [vmem:[#allocation8 + $0x460] sm:$0xff]
    %v529 = vld [vmem:[#allocation8 + $0x468] sm:$0xff]
    %v530 = vld [vmem:[#allocation8 + $0x470] sm:$0xff]
    %v531 = vld [vmem:[#allocation8 + $0x478] sm:$0xff]
    %v532 = vld [vmem:[#allocation8 + $0x480] sm:$0xff]
    %v533 = vld [vmem:[#allocation8 + $0x488] sm:$0xff]
    %v534 = vld [vmem:[#allocation8 + $0x490] sm:$0xff]
    %v535 = vld [vmem:[#allocation8 + $0x498] sm:$0xff]
    %v536 = vld [vmem:[#allocation8 + $0x4a0] sm:$0xff]
    %v537 = vld [vmem:[#allocation8 + $0x4a8] sm:$0xff]
    %v538 = vld [vmem:[#allocation8 + $0x4b0] sm:$0xff]
    %v539 = vld [vmem:[#allocation8 + $0x4b8] sm:$0xff]
    %v540 = vld [vmem:[#allocation8 + $0x4c0] sm:$0xff]
    %v541 = vld [vmem:[#allocation8 + $0x4c8] sm:$0xff]
    %v542 = vld [vmem:[#allocation8 + $0x4d0] sm:$0xff]
    %v543 = vld [vmem:[#allocation8 + $0x4d8] sm:$0xff]
    %v544 = vld [vmem:[#allocation8 + $0x4e0] sm:$0xff]
    %v545 = vld [vmem:[#allocation8 + $0x4e8] sm:$0xff]
    %v546 = vld [vmem:[#allocation8 + $0x4f0] sm:$0xff]
    %v547 = vld [vmem:[#allocation8 + $0x4f8] sm:$0xff]
    %v548 = vld [vmem:[#allocation8 + $0x500] sm:$0xff]
    %v549 = vld [vmem:[#allocation8 + $0x508] sm:$0xff]
    %v550 = vld [vmem:[#allocation8 + $0x510] sm:$0xff]
    %v551 = vld [vmem:[#allocation8 + $0x518] sm:$0xff]
    %v552 = vld [vmem:[#allocation8 + $0x520] sm:$0xff]
    %v553 = vld [vmem:[#allocation8 + $0x528] sm:$0xff]
    %v554 = vld [vmem:[#allocation8 + $0x530] sm:$0xff]
    %v555 = vld [vmem:[#allocation8 + $0x538] sm:$0xff]
    %v556 = vld [vmem:[#allocation8 + $0x540] sm:$0xff]
    %v557 = vld [vmem:[#allocation8 + $0x548] sm:$0xff]
    %v558 = vld [vmem:[#allocation8 + $0x550] sm:$0xff]
    %v559 = vld [vmem:[#allocation8 + $0x558] sm:$0xff]
    %v560 = vld [vmem:[#allocation8 + $0x560] sm:$0xff]
    %v561 = vld [vmem:[#allocation8 + $0x568] sm:$0xff]
    %v562 = vld [vmem:[#allocation8 + $0x570] sm:$0xff]
    %v563 = vld [vmem:[#allocation8 + $0x578] sm:$0xff]
    %v564 = vld [vmem:[#allocation8 + $0x580] sm:$0xff]
    %v565 = vld [vmem:[#allocation8 + $0x588] sm:$0xff]
    %v566 = vld [vmem:[#allocation8 + $0x590] sm:$0xff]
    %v567 = vld [vmem:[#allocation8 + $0x598] sm:$0xff]
    %v568 = vld [vmem:[#allocation8 + $0x5a0] sm:$0xff]
    %v569 = vld [vmem:[#allocation8 + $0x5a8] sm:$0xff]
    %v570 = vld [vmem:[#allocation8 + $0x5b0] sm:$0xff]
    %v571 = vld [vmem:[#allocation8 + $0x5b8] sm:$0xff]
    %v572 = vld [vmem:[#allocation8 + $0x5c0] sm:$0xff]
    %v573 = vld [vmem:[#allocation8 + $0x5c8] sm:$0xff]
    %v574 = vld [vmem:[#allocation8 + $0x5d0] sm:$0xff]
    %v575 = vld [vmem:[#allocation8 + $0x5d8] sm:$0xff]
    %v576 = vld [vmem:[#allocation8 + $0x5e0] sm:$0xff]
    %v577 = vld [vmem:[#allocation8 + $0x5e8] sm:$0xff]
    %v578 = vld [vmem:[#allocation8 + $0x5f0] sm:$0xff]
    %v579 = vld [vmem:[#allocation8 + $0x5f8] sm:$0xff]
    %v580 = vld [vmem:[#allocation8 + $0x600] sm:$0xff]
    %v581 = vld [vmem:[#allocation8 + $0x608] sm:$0xff]
    %v582 = vld [vmem:[#allocation8 + $0x610] sm:$0xff]
    %v583 = vld [vmem:[#allocation8 + $0x618] sm:$0xff]
    %v584 = vld [vmem:[#allocation8 + $0x620] sm:$0xff]
    %v585 = vld [vmem:[#allocation8 + $0x628] sm:$0xff]
    %v586 = vld [vmem:[#allocation8 + $0x630] sm:$0xff]
    %v587 = vld [vmem:[#allocation8 + $0x638] sm:$0xff]
    %v588 = vld [vmem:[#allocation8 + $0x640] sm:$0xff]
    %v589 = vld [vmem:[#allocation8 + $0x648] sm:$0xff]
    %v590 = vld [vmem:[#allocation8 + $0x650] sm:$0xff]
    %v591 = vld [vmem:[#allocation8 + $0x658] sm:$0xff]
    %v592 = vld [vmem:[#allocation8 + $0x660] sm:$0xff]
    %v593 = vld [vmem:[#allocation8 + $0x668] sm:$0xff]
    %v594 = vld [vmem:[#allocation8 + $0x670] sm:$0xff]
    %v595 = vld [vmem:[#allocation8 + $0x678] sm:$0xff]
    %v596 = vld [vmem:[#allocation8 + $0x680] sm:$0xff]
    %v597 = vld [vmem:[#allocation8 + $0x688] sm:$0xff]
    %v598 = vld [vmem:[#allocation8 + $0x690] sm:$0xff]
    %v599 = vld [vmem:[#allocation8 + $0x698] sm:$0xff]
    %v600 = vld [vmem:[#allocation8 + $0x6a0] sm:$0xff]
    %v601 = vld [vmem:[#allocation8 + $0x6a8] sm:$0xff]
    %v602 = vld [vmem:[#allocation8 + $0x6b0] sm:$0xff]
    %v603 = vld [vmem:[#allocation8 + $0x6b8] sm:$0xff]
    %v604 = vld [vmem:[#allocation8 + $0x6c0] sm:$0xff]
    %v605 = vld [vmem:[#allocation8 + $0x6c8] sm:$0xff]
    %v606 = vld [vmem:[#allocation8 + $0x6d0] sm:$0xff]
    %v607 = vld [vmem:[#allocation8 + $0x6d8] sm:$0xff]
    %v608 = vld [vmem:[#allocation8 + $0x6e0] sm:$0xff]
    %v609 = vld [vmem:[#allocation8 + $0x6e8] sm:$0xff]
    %v610 = vld [vmem:[#allocation8 + $0x6f0] sm:$0xff]
    %v611 = vld [vmem:[#allocation8 + $0x6f8] sm:$0xff]
    %v612 = vld [vmem:[#allocation8 + $0x700] sm:$0xff]
    %v613 = vld [vmem:[#allocation8 + $0x708] sm:$0xff]
    %v614 = vld [vmem:[#allocation8 + $0x710] sm:$0xff]
    %v615 = vld [vmem:[#allocation8 + $0x718] sm:$0xff]
    %v616 = vld [vmem:[#allocation8 + $0x720] sm:$0xff]
    %v617 = vld [vmem:[#allocation8 + $0x728] sm:$0xff]
    %v618 = vld [vmem:[#allocation8 + $0x730] sm:$0xff]
    %v619 = vld [vmem:[#allocation8 + $0x738] sm:$0xff]
    %v620 = vld [vmem:[#allocation8 + $0x740] sm:$0xff]
    %v621 = vld [vmem:[#allocation8 + $0x748] sm:$0xff]
    %v622 = vld [vmem:[#allocation8 + $0x750] sm:$0xff]
    %v623 = vld [vmem:[#allocation8 + $0x758] sm:$0xff]
    %v624 = vld [vmem:[#allocation8 + $0x760] sm:$0xff]
    %v625 = vld [vmem:[#allocation8 + $0x768] sm:$0xff]
    %v626 = vld [vmem:[#allocation8 + $0x770] sm:$0xff]
    %v627 = vld [vmem:[#allocation8 + $0x778] sm:$0xff]
    %v628 = vld [vmem:[#allocation8 + $0x780] sm:$0xff]
    %v629 = vld [vmem:[#allocation8 + $0x788] sm:$0xff]
    %v630 = vld [vmem:[#allocation8 + $0x790] sm:$0xff]
    %v631 = vld [vmem:[#allocation8 + $0x798] sm:$0xff]
    %v632 = vld [vmem:[#allocation8 + $0x7a0] sm:$0xff]
    %v633 = vld [vmem:[#allocation8 + $0x7a8] sm:$0xff]
    %v634 = vld [vmem:[#allocation8 + $0x7b0] sm:$0xff]
    %v635 = vld [vmem:[#allocation8 + $0x7b8] sm:$0xff]
    %v636 = vld [vmem:[#allocation8 + $0x7c0] sm:$0xff]
    %v637 = vld [vmem:[#allocation8 + $0x7c8] sm:$0xff]
    %v638 = vld [vmem:[#allocation8 + $0x7d0] sm:$0xff]
    %v639 = vld [vmem:[#allocation8 + $0x7d8] sm:$0xff]
    %v640 = vld [vmem:[#allocation8 + $0x7e0] sm:$0xff]
    %v641 = vld [vmem:[#allocation8 + $0x7e8] sm:$0xff]
    %v642 = vld [vmem:[#allocation8 + $0x7f0] sm:$0xff]
    %v643 = vld [vmem:[#allocation8 + $0x7f8] sm:$0xff]
    %v644 = vld [vmem:[%s4] sm:$0x1]
    %v646 = vperm.slane %v644, 0
    %648 = vmatpush.msra.mxu0 %v403
    %649 = vmatpush.msra.mxu0 %v402
    %650 = vmatpush.msra.mxu0 %v401
    %651 = vmatpush.msra.mxu0 %v400
    %652 = vmatpush.msra.mxu0 %v399
    %653 = vmatpush.msra.mxu0 %v398
    %654 = vmatpush.msra.mxu0 %v397
    %655 = vmatpush.msra.mxu0 %v396
    %656 = vmatpush.msra.mxu0 %v395
    %657 = vmatpush.msra.mxu0 %v394
    %658 = vmatpush.msra.mxu0 %v393
    %659 = vmatpush.msra.mxu0 %v392
    %660 = vmatpush.msra.mxu0 %v391
    %661 = vmatpush.msra.mxu0 %v390
    %662 = vmatpush.msra.mxu0 %v389
    %663 = vmatpush.msra.mxu0 %v388
    %664 = vmatmul.f32.gmra.mxu0 %v327
    %v665 = vpop.f32.mrf.mxu0
    %v666 = vadd.f32 %v646, %v665
    %667 = vdwg.mxu0
    %668 = vmatpush.msra.mxu0 %v419
    %669 = vmatpush.msra.mxu0 %v418
    %670 = vmatpush.msra.mxu0 %v417
    %671 = vmatpush.msra.mxu0 %v416
    %672 = vmatpush.msra.mxu0 %v415
    %673 = vmatpush.msra.mxu0 %v414
    %674 = vmatpush.msra.mxu0 %v413
    %675 = vmatpush.msra.mxu0 %v412
    %676 = vmatpush.msra.mxu0 %v411
    %677 = vmatpush.msra.mxu0 %v410
    %678 = vmatpush.msra.mxu0 %v409
    %679 = vmatpush.msra.mxu0 %v408
    %680 = vmatpush.msra.mxu0 %v407
    %681 = vmatpush.msra.mxu0 %v406
    %682 = vmatpush.msra.mxu0 %v405
    %683 = vmatpush.msra.mxu0 %v404
    %684 = vmatmul.f32.gmra.mxu0 %v330
    %v685 = vpop.f32.mrf.mxu0
    %v686 = vadd.f32 %v666, %v685
    %687 = vdwg.mxu0
    %688 = vmatpush.msra.mxu0 %v435
    %689 = vmatpush.msra.mxu0 %v434
    %690 = vmatpush.msra.mxu0 %v433
    %691 = vmatpush.msra.mxu0 %v432
    %692 = vmatpush.msra.mxu0 %v431
    %693 = vmatpush.msra.mxu0 %v430
    %694 = vmatpush.msra.mxu0 %v429
    %695 = vmatpush.msra.mxu0 %v428
    %696 = vmatpush.msra.mxu0 %v427
    %697 = vmatpush.msra.mxu0 %v426
    %698 = vmatpush.msra.mxu0 %v425
    %699 = vmatpush.msra.mxu0 %v424
    %700 = vmatpush.msra.mxu0 %v423
    %701 = vmatpush.msra.mxu0 %v422
    %702 = vmatpush.msra.mxu0 %v421
    %703 = vmatpush.msra.mxu0 %v420
    %704 = vmatmul.f32.gmra.mxu0 %v334
    %v705 = vpop.f32.mrf.mxu0
    %v706 = vadd.f32 %v686, %v705
    %707 = vdwg.mxu0
    %708 = vmatpush.msra.mxu0 %v451
    %709 = vmatpush.msra.mxu0 %v450
    %710 = vmatpush.msra.mxu0 %v449
    %711 = vmatpush.msra.mxu0 %v448
    %712 = vmatpush.msra.mxu0 %v447
    %713 = vmatpush.msra.mxu0 %v446
    %714 = vmatpush.msra.mxu0 %v445
    %715 = vmatpush.msra.mxu0 %v444
    %716 = vmatpush.msra.mxu0 %v443
    %717 = vmatpush.msra.mxu0 %v442
    %718 = vmatpush.msra.mxu0 %v441
    %719 = vmatpush.msra.mxu0 %v440
    %720 = vmatpush.msra.mxu0 %v439
    %721 = vmatpush.msra.mxu0 %v438
    %722 = vmatpush.msra.mxu0 %v437
    %723 = vmatpush.msra.mxu0 %v436
    %724 = vmatmul.f32.gmra.mxu0 %v338
    %v725 = vpop.f32.mrf.mxu0
    %v726 = vadd.f32 %v706, %v725
    %727 = vdwg.mxu0
    %728 = vmatpush.msra.mxu0 %v467
    %729 = vmatpush.msra.mxu0 %v466
    %730 = vmatpush.msra.mxu0 %v465
    %731 = vmatpush.msra.mxu0 %v464
    %732 = vmatpush.msra.mxu0 %v463
    %733 = vmatpush.msra.mxu0 %v462
    %734 = vmatpush.msra.mxu0 %v461
    %735 = vmatpush.msra.mxu0 %v460
    %736 = vmatpush.msra.mxu0 %v459
    %737 = vmatpush.msra.mxu0 %v458
    %738 = vmatpush.msra.mxu0 %v457
    %739 = vmatpush.msra.mxu0 %v456
    %740 = vmatpush.msra.mxu0 %v455
    %741 = vmatpush.msra.mxu0 %v454
    %742 = vmatpush.msra.mxu0 %v453
    %743 = vmatpush.msra.mxu0 %v452
    %744 = vmatmul.f32.gmra.mxu0 %v342
    %v745 = vpop.f32.mrf.mxu0
    %v746 = vadd.f32 %v726, %v745
    %747 = vdwg.mxu0
    %748 = vmatpush.msra.mxu0 %v483
    %749 = vmatpush.msra.mxu0 %v482
    %750 = vmatpush.msra.mxu0 %v481
    %751 = vmatpush.msra.mxu0 %v480
    %752 = vmatpush.msra.mxu0 %v479
    %753 = vmatpush.msra.mxu0 %v478
    %754 = vmatpush.msra.mxu0 %v477
    %755 = vmatpush.msra.mxu0 %v476
    %756 = vmatpush.msra.mxu0 %v475
    %757 = vmatpush.msra.mxu0 %v474
    %758 = vmatpush.msra.mxu0 %v473
    %759 = vmatpush.msra.mxu0 %v472
    %760 = vmatpush.msra.mxu0 %v471
    %761 = vmatpush.msra.mxu0 %v470
    %762 = vmatpush.msra.mxu0 %v469
    %763 = vmatpush.msra.mxu0 %v468
    %764 = vmatmul.f32.gmra.mxu0 %v346
    %v765 = vpop.f32.mrf.mxu0
    %v766 = vadd.f32 %v746, %v765
    %767 = vdwg.mxu0
    %768 = vmatpush.msra.mxu0 %v499
    %769 = vmatpush.msra.mxu0 %v498
    %770 = vmatpush.msra.mxu0 %v497
    %771 = vmatpush.msra.mxu0 %v496
    %772 = vmatpush.msra.mxu0 %v495
    %773 = vmatpush.msra.mxu0 %v494
    %774 = vmatpush.msra.mxu0 %v493
    %775 = vmatpush.msra.mxu0 %v492
    %776 = vmatpush.msra.mxu0 %v491
    %777 = vmatpush.msra.mxu0 %v490
    %778 = vmatpush.msra.mxu0 %v489
    %779 = vmatpush.msra.mxu0 %v488
    %780 = vmatpush.msra.mxu0 %v487
    %781 = vmatpush.msra.mxu0 %v486
    %782 = vmatpush.msra.mxu0 %v485
    %783 = vmatpush.msra.mxu0 %v484
    %784 = vmatmul.f32.gmra.mxu0 %v350
    %v785 = vpop.f32.mrf.mxu0
    %v786 = vadd.f32 %v766, %v785
    %787 = vdwg.mxu0
    %788 = vmatpush.msra.mxu0 %v515
    %789 = vmatpush.msra.mxu0 %v514
    %790 = vmatpush.msra.mxu0 %v513
    %791 = vmatpush.msra.mxu0 %v512
    %792 = vmatpush.msra.mxu0 %v511
    %793 = vmatpush.msra.mxu0 %v510
    %794 = vmatpush.msra.mxu0 %v509
    %795 = vmatpush.msra.mxu0 %v508
    %796 = vmatpush.msra.mxu0 %v507
    %797 = vmatpush.msra.mxu0 %v506
    %798 = vmatpush.msra.mxu0 %v505
    %799 = vmatpush.msra.mxu0 %v504
    %800 = vmatpush.msra.mxu0 %v503
    %801 = vmatpush.msra.mxu0 %v502
    %802 = vmatpush.msra.mxu0 %v501
    %803 = vmatpush.msra.mxu0 %v500
    %804 = vmatmul.f32.gmra.mxu0 %v354
    %v805 = vpop.f32.mrf.mxu0
    %v806 = vadd.f32 %v786, %v805
    %807 = vdwg.mxu0
    %808 = vmatpush.msra.mxu0 %v531
    %809 = vmatpush.msra.mxu0 %v530
    %810 = vmatpush.msra.mxu0 %v529
    %811 = vmatpush.msra.mxu0 %v528
    %812 = vmatpush.msra.mxu0 %v527
    %813 = vmatpush.msra.mxu0 %v526
    %814 = vmatpush.msra.mxu0 %v525
    %815 = vmatpush.msra.mxu0 %v524
    %816 = vmatpush.msra.mxu0 %v523
    %817 = vmatpush.msra.mxu0 %v522
    %818 = vmatpush.msra.mxu0 %v521
    %819 = vmatpush.msra.mxu0 %v520
    %820 = vmatpush.msra.mxu0 %v519
    %821 = vmatpush.msra.mxu0 %v518
    %822 = vmatpush.msra.mxu0 %v517
    %823 = vmatpush.msra.mxu0 %v516
    %824 = vmatmul.f32.gmra.mxu0 %v359
    %v825 = vpop.f32.mrf.mxu0
    %v826 = vadd.f32 %v806, %v825
    %827 = vdwg.mxu0
    %828 = vmatpush.msra.mxu0 %v547
    %829 = vmatpush.msra.mxu0 %v546
    %830 = vmatpush.msra.mxu0 %v545
    %831 = vmatpush.msra.mxu0 %v544
    %832 = vmatpush.msra.mxu0 %v543
    %833 = vmatpush.msra.mxu0 %v542
    %834 = vmatpush.msra.mxu0 %v541
    %835 = vmatpush.msra.mxu0 %v540
    %836 = vmatpush.msra.mxu0 %v539
    %837 = vmatpush.msra.mxu0 %v538
    %838 = vmatpush.msra.mxu0 %v537
    %839 = vmatpush.msra.mxu0 %v536
    %840 = vmatpush.msra.mxu0 %v535
    %841 = vmatpush.msra.mxu0 %v534
    %842 = vmatpush.msra.mxu0 %v533
    %843 = vmatpush.msra.mxu0 %v532
    %844 = vmatmul.f32.gmra.mxu0 %v362
    %v845 = vpop.f32.mrf.mxu0
    %v846 = vadd.f32 %v826, %v845
    %847 = vdwg.mxu0
    %848 = vmatpush.msra.mxu0 %v563
    %849 = vmatpush.msra.mxu0 %v562
    %850 = vmatpush.msra.mxu0 %v561
    %851 = vmatpush.msra.mxu0 %v560
    %852 = vmatpush.msra.mxu0 %v559
    %853 = vmatpush.msra.mxu0 %v558
    %854 = vmatpush.msra.mxu0 %v557
    %855 = vmatpush.msra.mxu0 %v556
    %856 = vmatpush.msra.mxu0 %v555
    %857 = vmatpush.msra.mxu0 %v554
    %858 = vmatpush.msra.mxu0 %v553
    %859 = vmatpush.msra.mxu0 %v552
    %860 = vmatpush.msra.mxu0 %v551
    %861 = vmatpush.msra.mxu0 %v550
    %862 = vmatpush.msra.mxu0 %v549
    %863 = vmatpush.msra.mxu0 %v548
    %864 = vmatmul.f32.gmra.mxu0 %v366
    %v865 = vpop.f32.mrf.mxu0
    %v866 = vadd.f32 %v846, %v865
    %867 = vdwg.mxu0
    %868 = vmatpush.msra.mxu0 %v579
    %869 = vmatpush.msra.mxu0 %v578
    %870 = vmatpush.msra.mxu0 %v577
    %871 = vmatpush.msra.mxu0 %v576
    %872 = vmatpush.msra.mxu0 %v575
    %873 = vmatpush.msra.mxu0 %v574
    %874 = vmatpush.msra.mxu0 %v573
    %875 = vmatpush.msra.mxu0 %v572
    %876 = vmatpush.msra.mxu0 %v571
    %877 = vmatpush.msra.mxu0 %v570
    %878 = vmatpush.msra.mxu0 %v569
    %879 = vmatpush.msra.mxu0 %v568
    %880 = vmatpush.msra.mxu0 %v567
    %881 = vmatpush.msra.mxu0 %v566
    %882 = vmatpush.msra.mxu0 %v565
    %883 = vmatpush.msra.mxu0 %v564
    %884 = vmatmul.f32.gmra.mxu0 %v370
    %v885 = vpop.f32.mrf.mxu0
    %v886 = vadd.f32 %v866, %v885
    %887 = vdwg.mxu0
    %888 = vmatpush.msra.mxu0 %v595
    %889 = vmatpush.msra.mxu0 %v594
    %890 = vmatpush.msra.mxu0 %v593
    %891 = vmatpush.msra.mxu0 %v592
    %892 = vmatpush.msra.mxu0 %v591
    %893 = vmatpush.msra.mxu0 %v590
    %894 = vmatpush.msra.mxu0 %v589
    %895 = vmatpush.msra.mxu0 %v588
    %896 = vmatpush.msra.mxu0 %v587
    %897 = vmatpush.msra.mxu0 %v586
    %898 = vmatpush.msra.mxu0 %v585
    %899 = vmatpush.msra.mxu0 %v584
    %900 = vmatpush.msra.mxu0 %v583
    %901 = vmatpush.msra.mxu0 %v582
    %902 = vmatpush.msra.mxu0 %v581
    %903 = vmatpush.msra.mxu0 %v580
    %904 = vmatmul.f32.gmra.mxu0 %v374
    %v905 = vpop.f32.mrf.mxu0
    %v906 = vadd.f32 %v886, %v905
    %907 = vdwg.mxu0
    %908 = vmatpush.msra.mxu0 %v611
    %909 = vmatpush.msra.mxu0 %v610
    %910 = vmatpush.msra.mxu0 %v609
    %911 = vmatpush.msra.mxu0 %v608
    %912 = vmatpush.msra.mxu0 %v607
    %913 = vmatpush.msra.mxu0 %v606
    %914 = vmatpush.msra.mxu0 %v605
    %915 = vmatpush.msra.mxu0 %v604
    %916 = vmatpush.msra.mxu0 %v603
    %917 = vmatpush.msra.mxu0 %v602
    %918 = vmatpush.msra.mxu0 %v601
    %919 = vmatpush.msra.mxu0 %v600
    %920 = vmatpush.msra.mxu0 %v599
    %921 = vmatpush.msra.mxu0 %v598
    %922 = vmatpush.msra.mxu0 %v597
    %923 = vmatpush.msra.mxu0 %v596
    %924 = vmatmul.f32.gmra.mxu0 %v378
    %v925 = vpop.f32.mrf.mxu0
    %v926 = vadd.f32 %v906, %v925
    %927 = vdwg.mxu0
    %928 = vmatpush.msra.mxu0 %v627
    %929 = vmatpush.msra.mxu0 %v626
    %930 = vmatpush.msra.mxu0 %v625
    %931 = vmatpush.msra.mxu0 %v624
    %932 = vmatpush.msra.mxu0 %v623
    %933 = vmatpush.msra.mxu0 %v622
    %934 = vmatpush.msra.mxu0 %v621
    %935 = vmatpush.msra.mxu0 %v620
    %936 = vmatpush.msra.mxu0 %v619
    %937 = vmatpush.msra.mxu0 %v618
    %938 = vmatpush.msra.mxu0 %v617
    %939 = vmatpush.msra.mxu0 %v616
    %940 = vmatpush.msra.mxu0 %v615
    %941 = vmatpush.msra.mxu0 %v614
    %942 = vmatpush.msra.mxu0 %v613
    %943 = vmatpush.msra.mxu0 %v612
    %944 = vmatmul.f32.gmra.mxu0 %v382
    %v945 = vpop.f32.mrf.mxu0
    %v946 = vadd.f32 %v926, %v945
    %947 = vdwg.mxu0
    %948 = vmatpush.msra.mxu0 %v643
    %949 = vmatpush.msra.mxu0 %v642
    %950 = vmatpush.msra.mxu0 %v641
    %951 = vmatpush.msra.mxu0 %v640
    %952 = vmatpush.msra.mxu0 %v639
    %953 = vmatpush.msra.mxu0 %v638
    %954 = vmatpush.msra.mxu0 %v637
    %955 = vmatpush.msra.mxu0 %v636
    %956 = vmatpush.msra.mxu0 %v635
    %957 = vmatpush.msra.mxu0 %v634
    %958 = vmatpush.msra.mxu0 %v633
    %959 = vmatpush.msra.mxu0 %v632
    %960 = vmatpush.msra.mxu0 %v631
    %961 = vmatpush.msra.mxu0 %v630
    %962 = vmatpush.msra.mxu0 %v629
    %963 = vmatpush.msra.mxu0 %v628
    %964 = vmatmul.f32.gmra.mxu0 %v386
    %v965 = vpop.f32.mrf.mxu0
    %v966 = vadd.f32 %v946, %v965
    %967 = vdwg.mxu0
    %vm968 = vcmask 254976
    %969 = vst.msk [vmem:[#allocation10] sm:$0x3] %vm968, %v966
    // Predicated region
    $region38: #{forward.1} parent=1 // pred_check
      _
    $region39: #{forward.1} parent=1 // pred_check_branch
      %971 = sbr.rel (0) target = $region41
    $region40: #{forward.1} parent=1 // pred_region
      %973 = vsyncadd [#allocation4], 0
      %s975 = sshll.u32 [#allocation10], 4
      %s976 = int_to_ptr.vmem [resolvable:$true] %s975
      %s977 = sshll.u32 %s5, 4
      %s978 = int_to_ptr.hbm [resolvable:$true] %s977
      %980 = dma.vmem_to_hbm [thread:$0]  %s976, 32, %s978, [#allocation4]
    $region41: #{forward.1} parent=1 // pred_fallthru
      _
    // Predicated region
    $region42: #{forward.1} parent=1 // pred_check
      _
    $region43: #{forward.1} parent=1 // pred_check_branch
      %982 = sbr.rel (0) target = $region45
    $region44: #{forward.1} parent=1 // pred_region
      %984 = dma.done [#allocation4], 32
    $region45: #{forward.1} parent=1 // pred_fallthru
      _
    %985 = vsyncpa [#allocation3], 1
    %986 = vsyncpa [#allocation6], 1
    %987 = vsyncpa [#allocation9], 1
    %988 = vsyncpa [#allocation4], 1

</llo_original>
